<compile_context>
chip_gen: v7x
topology: tpu7x:2x2x1
jax: 0.10.0
libtpu: 0.0.40
codegen_flags: <defaults>
</compile_context>

<pallas_src>
import functools

import jax
import jax.numpy as jnp
from jax.experimental import pallas as pl
from jax.experimental.pallas import tpu as pltpu


# --------------------------------------------------------------------------
# Generation-aware defaults (unknown chips fall back to conservative values
# that are correct everywhere).
# --------------------------------------------------------------------------
def _device_kind():
    try:
        return jax.devices()[0].device_kind.lower()
    except Exception:
        return ""


_KIND = _device_kind()
_OLD_GEN = any(s in _KIND for s in ("v2", "v3", "v4", "v5"))  # 128x128 MXU
# 256-wide CDF prefix blocks for the 256x256 MXU on v6e/v7x; 128 on older chips.
_DEFAULT_C_BLK = 128 if _OLD_GEN else 256
# v7x has only 64 MiB VMEM per TensorCore -> leave headroom; v5e/v6e have 128 MiB.
_VMEM_LIMIT = (64 if (_OLD_GEN or "v6" in _KIND) else 48) * 1024 * 1024


def _round_up(a, b):
    return (a + b - 1) // b * b


def _pad2d(a, rows, cols):
    r, c = a.shape
    if r == rows and c == cols:
        return a
    return jnp.pad(a, ((0, rows - r), (0, cols - c)))


def _largest_divisor_tile(n_pad, align, cap):
    """Largest multiple of `align` that divides `n_pad` and is <= cap."""
    nb = n_pad // align
    best = 1
    for d in range(1, min(nb, cap // align) + 1):
        if nb % d == 0:
            best = d
    return best * align


def _split_f32_to_bf16(a):
    """Two-term bf16 split: a ~= hi + lo with ~16 mantissa bits retained."""
    hi = a.astype(jnp.bfloat16)
    lo = (a - hi.astype(jnp.float32)).astype(jnp.bfloat16)
    return hi, lo


# --------------------------------------------------------------------------
# Phase 1: multinomial sampling (inverse CDF), rows x C-chunks grid.
# --------------------------------------------------------------------------
def _sample_kernel(t_ref, w_ref, idx_ref, base_sc, acc_sc, *, k, n_cat, c_blk):
    """One (row-tile, C-chunk) grid step of inverse-CDF multinomial sampling.

    t_ref   : (tile_n, k)       f32  per-draw targets u * row_total
    w_ref   : (tile_n, c_chunk) f32  weight chunk streamed over the C axis
    idx_ref : (tile_n, k)       i32  sampled indices (written at the last chunk)
    base_sc : (tile_n, 1)       f32  CDF carry across C-chunks
    acc_sc  : (k, tile_n, 128)  i32  per-draw lane-wise compare-count accumulators
    """
    ci = pl.program_id(1)
    nc = pl.num_programs(1)

    @pl.when(ci == 0)
    def _():
        base_sc[...] = jnp.zeros_like(base_sc)
        acc_sc[...] = jnp.zeros_like(acc_sc)

    w = w_ref[...]                                   # (tile_n, c_chunk)
    targets = t_ref[...]                             # (tile_n, k)
    tile_n, c_chunk = w.shape
    nblk = c_chunk // c_blk
    nfold = c_blk // 128

    # Fixed upper-triangular ones (exact in bf16): within-block inclusive
    # prefix sums on the MXU; O(c_blk^2) VMEM independent of C.
    row = jax.lax.broadcasted_iota(jnp.int32, (c_blk, c_blk), 0)
    col = jax.lax.broadcasted_iota(jnp.int32, (c_blk, c_blk), 1)
    tri = (row <= col).astype(jnp.bfloat16)

    base = base_sc[...]                              # (tile_n, 1) carry
    accs = [acc_sc[j] for j in range(k)]             # k x (tile_n, 128) i32

    for b in range(nblk):                            # static unroll (<= 8)
        wb = w[:, b * c_blk:(b + 1) * c_blk]
        # Near-f32 prefix sums via two DEFAULT-precision bf16 MXU passes
        # (tri is exactly representable in bf16, so no third pass is needed).
        wb_hi, wb_lo = _split_f32_to_bf16(wb)
        local = (jnp.dot(wb_hi, tri, preferred_element_type=jnp.float32) +
                 jnp.dot(wb_lo, tri, preferred_element_type=jnp.float32))
        cdf = base + local                           # (tile_n, c_blk)
        for j in range(k):
            cmp = (cdf < targets[:, j:j + 1]).astype(jnp.int32)
            folded = cmp[:, 0:128]
            for f in range(1, nfold):                # VPU adds only
                folded = folded + cmp[:, f * 128:(f + 1) * 128]
            accs[j] = accs[j] + folded
        base = base + local[:, c_blk - 1:c_blk]

    base_sc[...] = base
    for j in range(k):
        acc_sc[j] = accs[j]

    @pl.when(ci == nc - 1)
    def _():
        # One cross-lane reduce per draw per row tile; single (tile_n,k) store.
        lane = jax.lax.broadcasted_iota(jnp.int32, (tile_n, k), 1)
        idx = jnp.zeros((tile_n, k), jnp.int32)
        for j in range(k):
            cnt = jnp.sum(accs[j], axis=-1, keepdims=True)       # (tile_n, 1)
            idx = jnp.where(lane == j, cnt, idx)
        idx_ref[...] = jnp.minimum(idx, jnp.int32(n_cat - 1))


def _sample_indices(w_pad, targets, *, k, n_cat, tile_n, c_chunk, c_blk):
    n_pad, c_pad = w_pad.shape
    kernel = functools.partial(_sample_kernel, k=k, n_cat=n_cat, c_blk=c_blk)
    return pl.pallas_call(
        kernel,
        out_shape=jax.ShapeDtypeStruct((n_pad, k), jnp.int32),
        grid=(n_pad // tile_n, c_pad // c_chunk),
        in_specs=[
            pl.BlockSpec((tile_n, k), lambda i, c: (i, 0)),        # targets
            pl.BlockSpec((tile_n, c_chunk), lambda i, c: (i, c)),  # weights
        ],
        out_specs=pl.BlockSpec((tile_n, k), lambda i, c: (i, 0)),
        scratch_shapes=[
            pltpu.VMEM((tile_n, 1), jnp.float32),
            pltpu.VMEM((k, tile_n, 128), jnp.int32),
        ],
        compiler_params=pltpu.CompilerParams(
            dimension_semantics=("parallel", "arbitrary"),
            vmem_limit_bytes=_VMEM_LIMIT,
        ),
    )(targets, w_pad)


# --------------------------------------------------------------------------
# Phase 2: A = xs @ ys^T as k rank-1 VPU updates, tiled over (Nx, Ny).
# --------------------------------------------------------------------------
def _gram_kernel(xs_ref, ys_t_ref, a_ref, *, k, use_f32):
    if use_f32:
        xs = xs_ref[...].astype(jnp.float32)          # exact for small indices
        yt = ys_t_ref[...].astype(jnp.float32)
    else:
        xs = xs_ref[...]
        yt = ys_t_ref[...]
    acc = xs[:, 0:1] * yt[0:1, :]                     # (tm, tn)
    for j in range(1, k):
        acc = acc + xs[:, j:j + 1] * yt[j:j + 1, :]
    a_ref[...] = acc.astype(jnp.int32)


def _gram(xs, ys_t, *, k, tm, tn, use_f32):
    nx_pad = xs.shape[0]
    ny_pad = ys_t.shape[1]
    kernel = functools.partial(_gram_kernel, k=k, use_f32=use_f32)
    return pl.pallas_call(
        kernel,
        out_shape=jax.ShapeDtypeStruct((nx_pad, ny_pad), jnp.int32),
        grid=(nx_pad // tm, ny_pad // tn),
        in_specs=[
            pl.BlockSpec((tm, k), lambda i, j: (i, 0)),
            pl.BlockSpec((k, tn), lambda i, j: (0, j)),
        ],
        out_specs=pl.BlockSpec((tm, tn), lambda i, j: (i, j)),
        compiler_params=pltpu.CompilerParams(
            dimension_semantics=("parallel", "parallel"),
            vmem_limit_bytes=_VMEM_LIMIT,
        ),
    )(xs, ys_t)


# --------------------------------------------------------------------------
# balance_needed=False path: standard tiled matmul A = x @ y^T.
# --------------------------------------------------------------------------
def _plain_matmul_kernel(x_ref, y_ref, o_ref, *, f32_via_bf16_3x):
    @pl.when(pl.program_id(2) == 0)
    def _():
        o_ref[...] = jnp.zeros_like(o_ref)
    dims = (((1,), (1,)), ((), ()))
    if f32_via_bf16_3x:
        # Manual bf16_3x: ~f32 accuracy at half the cost of 6-pass HIGHEST.
        xh, xl = _split_f32_to_bf16(x_ref[...])
        yh, yl = _split_f32_to_bf16(y_ref[...])
        acc = jax.lax.dot_general(xh, yh, dims, preferred_element_type=jnp.float32)
        acc = acc + jax.lax.dot_general(xh, yl, dims, preferred_element_type=jnp.float32)
        acc = acc + jax.lax.dot_general(xl, yh, dims, preferred_element_type=jnp.float32)
    else:
        acc = jax.lax.dot_general(x_ref[...], y_ref[...], dims,
                                  preferred_element_type=jnp.float32)
    o_ref[...] += acc


def _plain_matmul(x, y):
    nx, c = x.shape
    ny, _ = y.shape
    is_bf16 = (x.dtype == jnp.bfloat16 and y.dtype == jnp.bfloat16)
    work_dtype = jnp.bfloat16 if is_bf16 else jnp.float32

    nx_pad = _round_up(nx, 8)
    ny_pad = _round_up(ny, 128)
    c_pad = _round_up(c, 128)
    tm = _largest_divisor_tile(nx_pad, 8, 512)
    tn = _largest_divisor_tile(ny_pad, 128, 512)
    tk = _largest_divisor_tile(c_pad, 128, 512)

    x_p = _pad2d(x.astype(work_dtype), nx_pad, c_pad)
    y_p = _pad2d(y.astype(work_dtype), ny_pad, c_pad)
    kernel = functools.partial(_plain_matmul_kernel, f32_via_bf16_3x=not is_bf16)
    out = pl.pallas_call(
        kernel,
        out_shape=jax.ShapeDtypeStruct((nx_pad, ny_pad), jnp.float32),
        grid=(nx_pad // tm, ny_pad // tn, c_pad // tk),
        in_specs=[
            pl.BlockSpec((tm, tk), lambda i, j, kk: (i, kk)),
            pl.BlockSpec((tn, tk), lambda i, j, kk: (j, kk)),
        ],
        out_specs=pl.BlockSpec((tm, tn), lambda i, j, kk: (i, j)),
        compiler_params=pltpu.CompilerParams(
            dimension_semantics=("parallel", "parallel", "arbitrary"),
            vmem_limit_bytes=_VMEM_LIMIT,
        ),
    )(x_p, y_p)
    return out[:nx, :ny].astype(x.dtype)


# --------------------------------------------------------------------------
# Matcher.forward
# --------------------------------------------------------------------------
def matcher_forward(x, y, *, k=3, key=None, balance_needed=True):
    nx, c = x.shape
    ny, c2 = y.shape
    assert c == c2, "x and y must have the same number of categories"

    if not balance_needed:
        return _plain_matmul(x, y)

    if key is None:
        key = jax.random.PRNGKey(0)

    # C tiling: streamed as the trailing "arbitrary" grid axis of the sampler.
    c_pad = _round_up(c, 128)
    c_chunk = _largest_divisor_tile(c_pad, 128, 1024)
    c_blk = 256 if (_DEFAULT_C_BLK == 256 and c_chunk % 256 == 0) else 128

    # Row tiling: sampling tiles sized for the streaming pipeline (<=256 rows),
    # Gram tiles sized for lane-dense HBM writeback (tm<=512, tn<=2048).
    nx_pad = _round_up(nx, 8)
    ny_pad = _round_up(ny, 128)
    ts_x = _largest_divisor_tile(nx_pad, 8, 256)
    ts_y = _largest_divisor_tile(ny_pad, 8, 256)
    tm = _largest_divisor_tile(nx_pad, 8, 512)
    tn = _largest_divisor_tile(ny_pad, 128, 2048)

    x_p = _pad2d(x.astype(jnp.float32), nx_pad, c_pad)
    y_p = _pad2d(y.astype(jnp.float32), ny_pad, c_pad)

    # Uniforms and inverse-CDF targets u * row_total, precomputed outside the
    # kernel (trivially mem-bound; avoids in-kernel divides / NaNs for zero rows).
    kx, ky = jax.random.split(key)
    ux = jax.random.uniform(kx, (nx_pad, k), dtype=jnp.float32)
    uy = jax.random.uniform(ky, (ny_pad, k), dtype=jnp.float32)
    tx = ux * jnp.sum(x_p, axis=1, keepdims=True)
    ty = uy * jnp.sum(y_p, axis=1, keepdims=True)

    # Phase 1: sample each weight matrix exactly once.
    xs = _sample_indices(x_p, tx, k=k, n_cat=c, tile_n=ts_x,
                         c_chunk=c_chunk, c_blk=c_blk)            # (nx_pad, k)
    ys = _sample_indices(y_p, ty, k=k, n_cat=c, tile_n=ts_y,
                         c_chunk=c_chunk, c_blk=c_blk)            # (ny_pad, k)

    # Phase 2: tiled Gram; f32 rank-1 updates are exact while k*(C-1)^2 < 2^24.
    use_f32 = k * (c - 1) ** 2 < (1 << 24)
    a = _gram(xs, ys.T, k=k, tm=tm, tn=tn, use_f32=use_f32)       # (nx_pad, ny_pad)
    return a[:nx, :ny]


if __name__ == "__main__":
    K = 3
    NX, NY, C = 8, 8, 16

    key = jax.random.PRNGKey(0)
    kx, ky, ks = jax.random.split(key, 3)
    # Strictly positive categorical weights (torch.multinomial requires >= 0).
    x = jax.random.uniform(kx, (NX, C), jnp.float32, minval=0.1, maxval=1.0)
    y = jax.random.uniform(ky, (NY, C), jnp.float32, minval=0.1, maxval=1.0)

    # balance_needed=True path (sampling + index Gram matrix).
    a = matcher_forward(x, y, k=K, key=ks, balance_needed=True)
    a = jax.block_until_ready(a)
    assert a.shape == (NX, NY) and a.dtype == jnp.int32
    # Sampled indices are in [0, C-1], so each entry is in [0, K*(C-1)^2].
    assert int(jnp.min(a)) >= 0 and int(jnp.max(a)) <= K * (C - 1) ** 2

    # balance_needed=False path (plain x @ y.T) sanity check.
    a_nb = matcher_forward(x, y, balance_needed=False)
    a_nb = jax.block_until_ready(a_nb)
    ref = jnp.dot(x, y.T, precision=jax.lax.Precision.HIGHEST)
    assert jnp.allclose(a_nb, ref, atol=1e-3, rtol=1e-3)

    print("KERNEL_OK")
</pallas_src>

<mosaic_0001>
module attributes {stable_mosaic.version = 11 : i64} {
  func.func @_sample_kernel(%arg0: i32, %arg1: i32, %arg2: memref<8x3xf32, #tpu.memory_space<vmem>>, %arg3: memref<8x128xf32, #tpu.memory_space<vmem>>, %arg4: memref<8x3xi32, #tpu.memory_space<vmem>>, %arg5: memref<8x1xf32, #tpu.memory_space<vmem>>, %arg6: memref<3x8x128xi32, #tpu.memory_space<vmem>>) attributes {dimension_semantics = [#tpu.dimension_semantics<parallel>, #tpu.dimension_semantics<arbitrary>], iteration_bounds = array<i64: 1, 1>, scalar_prefetch = 0 : i64, scratch_operands = 2 : i64, tpu.core_type = #tpu.core_type<tc>, window_params = [{transform_indices = @transform_0, window_bounds = array<i64: 8, 3>}, {transform_indices = @transform_1, window_bounds = array<i64: 8, 128>}, {transform_indices = @transform_2, window_bounds = array<i64: 8, 3>}]} {
    %c0_i32 = arith.constant 0 : i32
    %0 = arith.cmpi eq, %arg1, %c0_i32 : i32
    %1 = arith.extui %0 : i1 to i32
    %c0_i32_0 = arith.constant 0 : i32
    %2 = arith.cmpi ne, %1, %c0_i32_0 : i32
    scf.if %2 {
      %cst_27 = arith.constant 0.000000e+00 : f32
      %57 = vector.broadcast %cst_27 : f32 to vector<8x1xf32>
      %c0_28 = arith.constant 0 : index
      %c0_29 = arith.constant 0 : index
      %58 = vector.load %arg5[%c0_28, %c0_29] : memref<8x1xf32, #tpu.memory_space<vmem>>, vector<8x1xf32>
      tpu.vector_store %arg5[%c0_28, %c0_29], %57 {strides = array<i32>} : memref<8x1xf32, #tpu.memory_space<vmem>>, vector<8x1xf32>,
      %c0_i32_30 = arith.constant 0 : i32
      %59 = vector.broadcast %c0_i32_30 : i32 to vector<3x8x128xi32>
      %c0_31 = arith.constant 0 : index
      %c0_32 = arith.constant 0 : index
      %c0_33 = arith.constant 0 : index
      %60 = vector.load %arg6[%c0_31, %c0_32, %c0_33] : memref<3x8x128xi32, #tpu.memory_space<vmem>>, vector<3x8x128xi32>
      tpu.vector_store %arg6[%c0_31, %c0_32, %c0_33], %59 {strides = array<i32>} : memref<3x8x128xi32, #tpu.memory_space<vmem>>, vector<3x8x128xi32>,
    } else {
    }
    %c0 = arith.constant 0 : index
    %c0_1 = arith.constant 0 : index
    %3 = vector.load %arg3[%c0, %c0_1] : memref<8x128xf32, #tpu.memory_space<vmem>>, vector<8x128xf32>
    %c0_2 = arith.constant 0 : index
    %c0_3 = arith.constant 0 : index
    %4 = vector.load %arg2[%c0_2, %c0_3] : memref<8x3xf32, #tpu.memory_space<vmem>>, vector<8x3xf32>
    %5 = tpu.iota {dimensions = array<i32: 0>} : vector<128x128xi32>
    %6 = tpu.iota {dimensions = array<i32: 1>} : vector<128x128xi32>
    %7 = arith.cmpi sle, %5, %6 : vector<128x128xi32>
    %8 = arith.extui %7 : vector<128x128xi1> to vector<128x128xi32>
    %9 = arith.sitofp %8 : vector<128x128xi32> to vector<128x128xf32>
    %10 = arith.truncf %9 : vector<128x128xf32> to vector<128x128xbf16>
    %c0_4 = arith.constant 0 : index
    %c0_5 = arith.constant 0 : index
    %11 = vector.load %arg5[%c0_4, %c0_5] : memref<8x1xf32, #tpu.memory_space<vmem>>, vector<8x1xf32>
    %c0_6 = arith.constant 0 : index
    %c0_7 = arith.constant 0 : index
    %c0_8 = arith.constant 0 : index
    %12 = vector.load %arg6[%c0_6, %c0_7, %c0_8] : memref<3x8x128xi32, #tpu.memory_space<vmem>>, vector<1x8x128xi32>
    %13 = vector.shape_cast %12 : vector<1x8x128xi32> to vector<8x128xi32>
    %c1 = arith.constant 1 : index
    %c0_9 = arith.constant 0 : index
    %c0_10 = arith.constant 0 : index
    %14 = vector.load %arg6[%c1, %c0_9, %c0_10] : memref<3x8x128xi32, #tpu.memory_space<vmem>>, vector<1x8x128xi32>
    %15 = vector.shape_cast %14 : vector<1x8x128xi32> to vector<8x128xi32>
    %c2 = arith.constant 2 : index
    %c0_11 = arith.constant 0 : index
    %c0_12 = arith.constant 0 : index
    %16 = vector.load %arg6[%c2, %c0_11, %c0_12] : memref<3x8x128xi32, #tpu.memory_space<vmem>>, vector<1x8x128xi32>
    %17 = vector.shape_cast %16 : vector<1x8x128xi32> to vector<8x128xi32>
    %18 = arith.truncf %3 : vector<8x128xf32> to vector<8x128xbf16>
    %19 = arith.extf %18 : vector<8x128xbf16> to vector<8x128xf32>
    %20 = arith.subf %3, %19 : vector<8x128xf32>
    %21 = arith.truncf %20 : vector<8x128xf32> to vector<8x128xbf16>
    %cst = arith.constant dense<0.000000e+00> : vector<8x128xf32>
    %22 = tpu.matmul %18, %10, %cst {dimension_numbers = #tpu.dot_dimension_numbers<[1], [0], [0], [1], [0, 0, 1, 1], [], []>} : vector<8x128xbf16>, vector<128x128xbf16>, vector<8x128xf32> -> vector<8x128xf32>
    %cst_13 = arith.constant dense<0.000000e+00> : vector<8x128xf32>
    %23 = tpu.matmul %21, %10, %cst_13 {dimension_numbers = #tpu.dot_dimension_numbers<[1], [0], [0], [1], [0, 0, 1, 1], [], []>} : vector<8x128xbf16>, vector<128x128xbf16>, vector<8x128xf32> -> vector<8x128xf32>
    %24 = arith.addf %22, %23 : vector<8x128xf32>
    %25 = vector.broadcast %11 : vector<8x1xf32> to vector<8x128xf32>
    %26 = arith.addf %25, %24 : vector<8x128xf32>
    %27 = vector.extract_strided_slice %4 {offsets = [0, 0], sizes = [8, 1], strides = [1, 1]} : vector<8x3xf32> to vector<8x1xf32>
    %28 = vector.broadcast %27 : vector<8x1xf32> to vector<8x128xf32>
    %29 = arith.cmpf olt, %26, %28 : vector<8x128xf32>
    %30 = arith.extui %29 : vector<8x128xi1> to vector<8x128xi32>
    %31 = arith.addi %13, %30 : vector<8x128xi32>
    %32 = vector.extract_strided_slice %4 {offsets = [0, 1], sizes = [8, 1], strides = [1, 1]} : vector<8x3xf32> to vector<8x1xf32>
    %33 = vector.broadcast %32 : vector<8x1xf32> to vector<8x128xf32>
    %34 = arith.cmpf olt, %26, %33 : vector<8x128xf32>
    %35 = arith.extui %34 : vector<8x128xi1> to vector<8x128xi32>
    %36 = arith.addi %15, %35 : vector<8x128xi32>
    %37 = vector.extract_strided_slice %4 {offsets = [0, 2], sizes = [8, 1], strides = [1, 1]} : vector<8x3xf32> to vector<8x1xf32>
    %38 = vector.broadcast %37 : vector<8x1xf32> to vector<8x128xf32>
    %39 = arith.cmpf olt, %26, %38 : vector<8x128xf32>
    %40 = arith.extui %39 : vector<8x128xi1> to vector<8x128xi32>
    %41 = arith.addi %17, %40 : vector<8x128xi32>
    %42 = vector.extract_strided_slice %24 {offsets = [0, 127], sizes = [8, 1], strides = [1, 1]} : vector<8x128xf32> to vector<8x1xf32>
    %43 = arith.addf %11, %42 : vector<8x1xf32>
    %c0_14 = arith.constant 0 : index
    %c0_15 = arith.constant 0 : index
    %44 = vector.load %arg5[%c0_14, %c0_15] : memref<8x1xf32, #tpu.memory_space<vmem>>, vector<8x1xf32>
    tpu.vector_store %arg5[%c0_14, %c0_15], %43 {strides = array<i32>} : memref<8x1xf32, #tpu.memory_space<vmem>>, vector<8x1xf32>,
    %c0_16 = arith.constant 0 : index
    %c0_17 = arith.constant 0 : index
    %c0_18 = arith.constant 0 : index
    %45 = vector.load %arg6[%c0_16, %c0_17, %c0_18] : memref<3x8x128xi32, #tpu.memory_space<vmem>>, vector<1x8x128xi32>
    %46 = vector.shape_cast %45 : vector<1x8x128xi32> to vector<8x128xi32>
    %47 = vector.shape_cast %31 : vector<8x128xi32> to vector<1x8x128xi32>
    tpu.vector_store %arg6[%c0_16, %c0_17, %c0_18], %47 {strides = array<i32>} : memref<3x8x128xi32, #tpu.memory_space<vmem>>, vector<1x8x128xi32>,
    %c1_19 = arith.constant 1 : index
    %c0_20 = arith.constant 0 : index
    %c0_21 = arith.constant 0 : index
    %48 = vector.load %arg6[%c1_19, %c0_20, %c0_21] : memref<3x8x128xi32, #tpu.memory_space<vmem>>, vector<1x8x128xi32>
    %49 = vector.shape_cast %48 : vector<1x8x128xi32> to vector<8x128xi32>
    %50 = vector.shape_cast %36 : vector<8x128xi32> to vector<1x8x128xi32>
    tpu.vector_store %arg6[%c1_19, %c0_20, %c0_21], %50 {strides = array<i32>} : memref<3x8x128xi32, #tpu.memory_space<vmem>>, vector<1x8x128xi32>,
    %c2_22 = arith.constant 2 : index
    %c0_23 = arith.constant 0 : index
    %c0_24 = arith.constant 0 : index
    %51 = vector.load %arg6[%c2_22, %c0_23, %c0_24] : memref<3x8x128xi32, #tpu.memory_space<vmem>>, vector<1x8x128xi32>
    %52 = vector.shape_cast %51 : vector<1x8x128xi32> to vector<8x128xi32>
    %53 = vector.shape_cast %41 : vector<8x128xi32> to vector<1x8x128xi32>
    tpu.vector_store %arg6[%c2_22, %c0_23, %c0_24], %53 {strides = array<i32>} : memref<3x8x128xi32, #tpu.memory_space<vmem>>, vector<1x8x128xi32>,
    %c0_i32_25 = arith.constant 0 : i32
    %54 = arith.cmpi eq, %arg1, %c0_i32_25 : i32
    %55 = arith.extui %54 : i1 to i32
    %c0_i32_26 = arith.constant 0 : i32
    %56 = arith.cmpi ne, %55, %c0_i32_26 : i32
    scf.if %56 {
      %57 = tpu.iota {dimensions = array<i32: 1>} : vector<8x3xi32>
      %c0_i32_27 = arith.constant 0 : i32
      %58 = vector.broadcast %c0_i32_27 : i32 to vector<8x3xi32>
      %cst_28 = arith.constant dense<0> : vector<8xi32>
      %59 = vector.multi_reduction <add>, %31, %cst_28 [1] : vector<8x128xi32> to vector<8xi32>
      %60 = vector.shape_cast %59 : vector<8xi32> to vector<8x1xi32>
      %c0_i32_29 = arith.constant 0 : i32
      %61 = vector.broadcast %c0_i32_29 : i32 to vector<8x3xi32>
      %62 = arith.cmpi eq, %57, %61 : vector<8x3xi32>
      %63 = vector.shape_cast %60 : vector<8x1xi32> to vector<8x1xi32>
      %64 = vector.broadcast %63 : vector<8x1xi32> to vector<8x3xi32>
      %65 = arith.select %62, %64, %58 : vector<8x3xi1>, vector<8x3xi32>
      %cst_30 = arith.constant dense<0> : vector<8xi32>
      %66 = vector.multi_reduction <add>, %36, %cst_30 [1] : vector<8x128xi32> to vector<8xi32>
      %67 = vector.shape_cast %66 : vector<8xi32> to vector<8x1xi32>
      %c1_i32 = arith.constant 1 : i32
      %68 = vector.broadcast %c1_i32 : i32 to vector<8x3xi32>
      %69 = arith.cmpi eq, %57, %68 : vector<8x3xi32>
      %70 = vector.shape_cast %67 : vector<8x1xi32> to vector<8x1xi32>
      %71 = vector.broadcast %70 : vector<8x1xi32> to vector<8x3xi32>
      %72 = arith.select %69, %71, %65 : vector<8x3xi1>, vector<8x3xi32>
      %cst_31 = arith.constant dense<0> : vector<8xi32>
      %73 = vector.multi_reduction <add>, %41, %cst_31 [1] : vector<8x128xi32> to vector<8xi32>
      %74 = vector.shape_cast %73 : vector<8xi32> to vector<8x1xi32>
      %c2_i32 = arith.constant 2 : i32
      %75 = vector.broadcast %c2_i32 : i32 to vector<8x3xi32>
      %76 = arith.cmpi eq, %57, %75 : vector<8x3xi32>
      %77 = vector.shape_cast %74 : vector<8x1xi32> to vector<8x1xi32>
      %78 = vector.broadcast %77 : vector<8x1xi32> to vector<8x3xi32>
      %79 = arith.select %76, %78, %72 : vector<8x3xi1>, vector<8x3xi32>
      %c15_i32 = arith.constant 15 : i32
      %80 = vector.broadcast %c15_i32 : i32 to vector<8x3xi32>
      %81 = arith.minsi %79, %80 : vector<8x3xi32>
      %c0_32 = arith.constant 0 : index
      %c0_33 = arith.constant 0 : index
      %82 = vector.load %arg4[%c0_32, %c0_33] : memref<8x3xi32, #tpu.memory_space<vmem>>, vector<8x3xi32>
      tpu.vector_store %arg4[%c0_32, %c0_33], %81 {strides = array<i32>} : memref<8x3xi32, #tpu.memory_space<vmem>>, vector<8x3xi32>,
    } else {
    }
    return
  }
  func.func @transform_0(%arg0: i32, %arg1: i32) -> (i32, i32) {
    %c0_i32 = arith.constant 0 : i32
    %c0_i32_0 = arith.constant 0 : i32
    return %arg0, %c0_i32 : i32, i32
  }
  func.func @transform_1(%arg0: i32, %arg1: i32) -> (i32, i32) {
    %c0_i32 = arith.constant 0 : i32
    return %arg0, %arg1 : i32, i32
  }
  func.func @transform_2(%arg0: i32, %arg1: i32) -> (i32, i32) {
    %c0_i32 = arith.constant 0 : i32
    %c0_i32_0 = arith.constant 0 : i32
    return %arg0, %c0_i32 : i32, i32
  }
}

</mosaic_0001>

<llo_original>
// kernel: tpu_custom_call.1
$region0: #{tpu_custom_call.1}
  #allocation0 [shape = 'u32[]', space=smem, size = 0x4, offset = 0x4, fixed_abs, tag = 'smem constant byte address 0x4 - core index']
  #allocation1 [shape = 'u32[144,128]{1,0:T(1,128)}', space=vmem, size = 0x12000, scoped, tag = 'internal scratch']
  #allocation2 [shape = 'f32[8,1]{1,0:T(8,128)}', space=vmem, size = 0x1000, scoped, tag = 'scratch operand']
  #allocation3 [shape = 's32[3,8,128]{2,1,0:T(8,128)}', space=vmem, size = 0x3000, scoped, tag = 'scratch operand']
  %s0 = inlined_call_operand.vmem [shape: f32[8,3], index: 0, kind: input, shape index: {}]
  %s1 = inlined_call_operand.vmem [shape: f32[8,128], index: 1, kind: input, shape index: {}]
  %s2 = inlined_call_operand.vmem [shape: s32[8,3], index: 2, kind: output, shape index: {}]
  %s3 = sld [smem:[#allocation0]]
  $region26: #{tpu_custom_call.1} parent=0
    _
  %s5 = ssub.s32 1, %s3
  %s6 = scalar_select 0, %s5, %s3
  // Predicated region
  $region2: #{tpu_custom_call.1} parent=0 // pred_check
    _
  $region3: #{tpu_custom_call.1} parent=0 // pred_check_branch
    %8 = sbr.rel (0) target = $region5
  $region4: #{tpu_custom_call.1} parent=0 // pred_region
    _
  $region5: #{tpu_custom_call.1} parent=0 // pred_fallthru
    _
  // Predicated region
  $region6: #{tpu_custom_call.1} parent=0 // pred_check
    _
  $region7: #{tpu_custom_call.1} parent=0 // pred_check_branch
    %10 = sbr.rel (0) target = $region9
  $region8: #{tpu_custom_call.1} parent=0 // pred_region
    _
  $region9: #{tpu_custom_call.1} parent=0 // pred_fallthru
    _
  %p12 = scmp.eq.s32.totalorder 0, 0
  // Predicated region
  $region10: #{tpu_custom_call.1} parent=0 // pred_check
    %p13 = pneg %p12
  $region11: #{tpu_custom_call.1} parent=0 // pred_check_branch
    %15 = sbr.rel (%p13) target = $region13
  $region12: #{tpu_custom_call.1} parent=0 // pred_region
    %vm16 = vcmask 7168
    %17 = vst.msk [vmem:[#allocation2] sm:$0xff] %vm16, 0.0
    %18 = vst [vmem:[#allocation3] sm:$0xff] 0
    %19 = vst [vmem:[#allocation3 + $0x8] sm:$0xff] 0
    %20 = vst [vmem:[#allocation3 + $0x10] sm:$0xff] 0
  $region13: #{tpu_custom_call.1} parent=0 // pred_fallthru
    _
  %v21 = vld [vmem:[%s1] sm:$0xff]
  %v22 = vld [vmem:[%s0] sm:$0xff]
  %v23 = vlaneseq
  %v24 = vshrl.u32 %v23, 7
  %v25 = vadd.s32 %v24, 8
  %v26 = vadd.s32 %v24, 16
  %v27 = vadd.s32 %v24, 24
  %v28 = vadd.s32 %v24, 32
  %v29 = vadd.s32 %v24, 40
  %v30 = vadd.s32 %v24, 48
  %v31 = vadd.s32 %v24, 56
  %v32 = vadd.s32 %v24, 64
  %v33 = vadd.s32 %v24, 72
  %v34 = vadd.s32 %v24, 80
  %v35 = vadd.s32 %v24, 88
  %v36 = vadd.s32 %v24, 96
  %v37 = vadd.s32 %v24, 104
  %v38 = vadd.s32 %v24, 112
  %v39 = vadd.s32 %v24, 120
  %v40 = vlaneseq
  %v41 = vand.u32 %v40, 127
  %vm42 = vcmp.le.s32.totalorder %v24, %v41
  %vm43 = vcmp.le.s32.totalorder %v25, %v41
  %vm44 = vcmp.le.s32.totalorder %v26, %v41
  %vm45 = vcmp.le.s32.totalorder %v27, %v41
  %vm46 = vcmp.le.s32.totalorder %v28, %v41
  %vm47 = vcmp.le.s32.totalorder %v29, %v41
  %vm48 = vcmp.le.s32.totalorder %v30, %v41
  %vm49 = vcmp.le.s32.totalorder %v31, %v41
  %vm50 = vcmp.le.s32.totalorder %v32, %v41
  %vm51 = vcmp.le.s32.totalorder %v33, %v41
  %vm52 = vcmp.le.s32.totalorder %v34, %v41
  %vm53 = vcmp.le.s32.totalorder %v35, %v41
  %vm54 = vcmp.le.s32.totalorder %v36, %v41
  %vm55 = vcmp.le.s32.totalorder %v37, %v41
  %vm56 = vcmp.le.s32.totalorder %v38, %v41
  %vm57 = vcmp.le.s32.totalorder %v39, %v41
  %v58 = vsel %vm42, 1, 0
  %v59 = vsel %vm43, 1, 0
  %v60 = vsel %vm44, 1, 0
  %v61 = vsel %vm45, 1, 0
  %v62 = vsel %vm46, 1, 0
  %v63 = vsel %vm47, 1, 0
  %v64 = vsel %vm48, 1, 0
  %v65 = vsel %vm49, 1, 0
  %v66 = vsel %vm50, 1, 0
  %v67 = vsel %vm51, 1, 0
  %v68 = vsel %vm52, 1, 0
  %v69 = vsel %vm53, 1, 0
  %v70 = vsel %vm54, 1, 0
  %v71 = vsel %vm55, 1, 0
  %v72 = vsel %vm56, 1, 0
  %v73 = vsel %vm57, 1, 0
  %v74 = vcvt.s32.f32 %v58
  %v75 = vcvt.s32.f32 %v59
  %v76 = vcvt.s32.f32 %v60
  %v77 = vcvt.s32.f32 %v61
  %v78 = vcvt.s32.f32 %v62
  %v79 = vcvt.s32.f32 %v63
  %v80 = vcvt.s32.f32 %v64
  %v81 = vcvt.s32.f32 %v65
  %v82 = vcvt.s32.f32 %v66
  %v83 = vcvt.s32.f32 %v67
  %v84 = vcvt.s32.f32 %v68
  %v85 = vcvt.s32.f32 %v69
  %v86 = vcvt.s32.f32 %v70
  %v87 = vcvt.s32.f32 %v71
  %v88 = vcvt.s32.f32 %v72
  %v89 = vcvt.s32.f32 %v73
  %v90 = vpack.c.bf16 %v75, %v74
  %v91 = vpack.c.bf16 %v77, %v76
  %v92 = vpack.c.bf16 %v79, %v78
  %v93 = vpack.c.bf16 %v81, %v80
  %v94 = vpack.c.bf16 %v83, %v82
  %v95 = vpack.c.bf16 %v85, %v84
  %v96 = vpack.c.bf16 %v87, %v86
  %v97 = vpack.c.bf16 %v89, %v88
  %v98 = vld [vmem:[#allocation2] sm:$0xff]
  %v99 = vld [vmem:[#allocation3] sm:$0xff]
  %s100 = scalar_lea.vmem [#allocation3], 8
  %v101 = vld [vmem:[%s100] sm:$0xff]
  %s102 = scalar_lea.vmem [#allocation3], 16
  %v103 = vld [vmem:[%s102] sm:$0xff]
  %v104 = vpack.c.bf16 %v21, %v21
  %v105 = vunpack.c.l.bf16 %v104
  %v106 = vsub.f32 %v21, %v105
  %v107 = vpack.c.bf16 %v106, %v106
  %108 = vmatprep.subr.bf16.mxu0 0
  %109 = vmatpush1.bf16.msra.mxu0 %v90
  %110 = vmatprep.subr.bf16.mxu0 0
  %111 = vmatpush1.bf16.msra.mxu0 %v91
  %112 = vmatprep.subr.bf16.mxu0 0
  %113 = vmatpush1.bf16.msra.mxu0 %v92
  %114 = vmatprep.subr.bf16.mxu0 0
  %115 = vmatpush1.bf16.msra.mxu0 %v93
  %116 = vmatprep.subr.bf16.mxu0 0
  %117 = vmatpush1.bf16.msra.mxu0 %v94
  %118 = vmatprep.subr.bf16.mxu0 0
  %119 = vmatpush1.bf16.msra.mxu0 %v95
  %120 = vmatprep.subr.bf16.mxu0 0
  %121 = vmatpush1.bf16.msra.mxu0 %v96
  %122 = vmatprep.subr.bf16.mxu0 0
  %123 = vmatpush1.bf16.msra.mxu0 %v97
  %124 = vmatprep.subr.bf16.mxu0 0
  %125 = vmatpush1.bf16.msra.mxu0 0
  %126 = vmatprep.subr.bf16.mxu0 0
  %127 = vmatpush1.bf16.msra.mxu0 0
  %128 = vmatprep.subr.bf16.mxu0 0
  %129 = vmatpush1.bf16.msra.mxu0 0
  %130 = vmatprep.subr.bf16.mxu0 0
  %131 = vmatpush1.bf16.msra.mxu0 0
  %132 = vmatprep.subr.bf16.mxu0 0
  %133 = vmatpush1.bf16.msra.mxu0 0
  %134 = vmatprep.subr.bf16.mxu0 0
  %135 = vmatpush1.bf16.msra.mxu0 0
  %136 = vmatprep.subr.bf16.mxu0 0
  %137 = vmatpush1.bf16.msra.mxu0 0
  %138 = vmatprep.subr.bf16.mxu0 0
  %139 = vmatpush1.bf16.msra.mxu0 0
  %140 = vmatprep.mubr.bf16.mxu0 0
  %141 = vmatmul.mubr.bf16.gmra.mrb[0].mxu0 %v107
  %v142 = vpop.f32.mrb[0].mxu0
  %v143 = vadd.f32 0.0, %v142
  %v144 = vpop.f32.mrb[0].mxu0
  %v145 = vpop.f32.mrb[0].mxu0
  %v146 = vpop.f32.mrb[0].mxu0
  %147 = vdwg.mxu0
  %148 = vmatprep.subr.bf16.mxu0 0
  %149 = vmatpush1.bf16.msra.mxu0 %v90
  %150 = vmatprep.subr.bf16.mxu0 0
  %151 = vmatpush1.bf16.msra.mxu0 %v91
  %152 = vmatprep.subr.bf16.mxu0 0
  %153 = vmatpush1.bf16.msra.mxu0 %v92
  %154 = vmatprep.subr.bf16.mxu0 0
  %155 = vmatpush1.bf16.msra.mxu0 %v93
  %156 = vmatprep.subr.bf16.mxu0 0
  %157 = vmatpush1.bf16.msra.mxu0 %v94
  %158 = vmatprep.subr.bf16.mxu0 0
  %159 = vmatpush1.bf16.msra.mxu0 %v95
  %160 = vmatprep.subr.bf16.mxu0 0
  %161 = vmatpush1.bf16.msra.mxu0 %v96
  %162 = vmatprep.subr.bf16.mxu0 0
  %163 = vmatpush1.bf16.msra.mxu0 %v97
  %164 = vmatprep.subr.bf16.mxu0 0
  %165 = vmatpush1.bf16.msra.mxu0 0
  %166 = vmatprep.subr.bf16.mxu0 0
  %167 = vmatpush1.bf16.msra.mxu0 0
  %168 = vmatprep.subr.bf16.mxu0 0
  %169 = vmatpush1.bf16.msra.mxu0 0
  %170 = vmatprep.subr.bf16.mxu0 0
  %171 = vmatpush1.bf16.msra.mxu0 0
  %172 = vmatprep.subr.bf16.mxu0 0
  %173 = vmatpush1.bf16.msra.mxu0 0
  %174 = vmatprep.subr.bf16.mxu0 0
  %175 = vmatpush1.bf16.msra.mxu0 0
  %176 = vmatprep.subr.bf16.mxu0 0
  %177 = vmatpush1.bf16.msra.mxu0 0
  %178 = vmatprep.subr.bf16.mxu0 0
  %179 = vmatpush1.bf16.msra.mxu0 0
  %180 = vmatprep.mubr.bf16.mxu0 0
  %181 = vmatmul.mubr.bf16.gmra.mrb[0].mxu0 %v104
  %v182 = vpop.f32.mrb[0].mxu0
  %v183 = vadd.f32 %v143, %v182
  %v184 = vpop.f32.mrb[0].mxu0
  %v185 = vpop.f32.mrb[0].mxu0
  %v186 = vpop.f32.mrb[0].mxu0
  %187 = vdwg.mxu0
  %189 = vset.pattern.permute.xlu0 0
  %190 = vperm.xlu0 %189, %v98
  %v191 = vpop.permute.xlu0 %190
  %v193 = vadd.f32 %v191, %v183
  %195 = vset.pattern.permute.xlu0 0
  %196 = vperm.xlu0 %195, %v22
  %v197 = vpop.permute.xlu0 %196
  %vm199 = vcmp.lt.f32.partialorder %v193, %v197
  %v200 = vsel %vm199, 1, 0
  %v201 = vadd.s32 %v99, %v200
  %202 = vset.pattern.permute.xlu0 1
  %203 = vperm.xlu0 %202, %v22
  %v204 = vpop.permute.xlu0 %203
  %vm206 = vcmp.lt.f32.partialorder %v193, %v204
  %v207 = vsel %vm206, 1, 0
  %v208 = vadd.s32 %v101, %v207
  %209 = vset.pattern.permute.xlu0 2
  %210 = vperm.xlu0 %209, %v22
  %v211 = vpop.permute.xlu0 %210
  %vm213 = vcmp.lt.f32.partialorder %v193, %v211
  %v214 = vsel %vm213, 1, 0
  %v215 = vadd.s32 %v103, %v214
  %217 = vrot.lane.b32.xlu0 %v183, 1
  %v218 = vpop.permute.xlu0 %217
  %v220 = vadd.f32 %v98, %v218
  %vm221 = vcmask 7168
  %222 = vst.msk [vmem:[#allocation2] sm:$0xff] %vm221, %v220
  %223 = vst [vmem:[#allocation3] sm:$0xff] %v201
  %224 = vst [vmem:[%s100] sm:$0xff] %v208
  %225 = vst [vmem:[%s102] sm:$0xff] %v215
  // Predicated region
  $region14: #{tpu_custom_call.1} parent=0 // pred_check
    %p226 = pneg %p12
  $region15: #{tpu_custom_call.1} parent=0 // pred_check_branch
    %228 = sbr.rel (%p226) target = $region17
  $region16: #{tpu_custom_call.1} parent=0 // pred_region
    %v229 = vand.u32 %v201, 65535
    %v230 = vshrl.u32 %v201, 16
    %v231 = vcvt.s32.f32 %v229
    %v232 = vcvt.s32.f32 %v230
    %233 = vadd.xlane.f32.xlu0 %v231
    %v234 = vpop.xlane.xlu0 %233
    %235 = vadd.xlane.f32.xlu0 %v232
    %v236 = vpop.xlane.xlu0 %235
    %v237 = vcvt.f32.s32 %v234
    %v238 = vcvt.f32.s32 %v236
    %v239 = vshll.u32 %v238, 16
    %v240 = vadd.s32 %v239, %v237
    %vm241 = vcmp.eq.s32.totalorder %v41, 0
    %v242 = vsel %vm241, %v240, 0
    %v243 = vand.u32 %v208, 65535
    %v244 = vshrl.u32 %v208, 16
    %v245 = vcvt.s32.f32 %v243
    %v246 = vcvt.s32.f32 %v244
    %247 = vadd.xlane.f32.xlu0 %v245
    %v248 = vpop.xlane.xlu0 %247
    %249 = vadd.xlane.f32.xlu0 %v246
    %v250 = vpop.xlane.xlu0 %249
    %v251 = vcvt.f32.s32 %v248
    %v252 = vcvt.f32.s32 %v250
    %v253 = vshll.u32 %v252, 16
    %v254 = vadd.s32 %v253, %v251
    %vm255 = vcmp.eq.s32.totalorder %v41, 1
    %v256 = vsel %vm255, %v254, %v242
    %v257 = vand.u32 %v215, 65535
    %v258 = vshrl.u32 %v215, 16
    %v259 = vcvt.s32.f32 %v257
    %v260 = vcvt.s32.f32 %v258
    %261 = vadd.xlane.f32.xlu0 %v259
    %v262 = vpop.xlane.xlu0 %261
    %263 = vadd.xlane.f32.xlu0 %v260
    %v264 = vpop.xlane.xlu0 %263
    %v265 = vcvt.f32.s32 %v262
    %v266 = vcvt.f32.s32 %v264
    %v267 = vshll.u32 %v266, 16
    %v268 = vadd.s32 %v267, %v265
    %vm269 = vcmp.eq.s32.totalorder %v41, 2
    %v270 = vsel %vm269, %v268, %v256
    %vm271 = vcmp.lt.s32.totalorder %v270, 15
    %v272 = vsel %vm271, %v270, 15
    %vm273 = vcmask 23552
    %274 = vst.msk [vmem:[%s2] sm:$0xff] %vm273, %v272
  $region17: #{tpu_custom_call.1} parent=0 // pred_fallthru
    _
  // Predicated region
  $region18: #{tpu_custom_call.1} parent=0 // pred_check
    _
  $region19: #{tpu_custom_call.1} parent=0 // pred_check_branch
    %276 = sbr.rel (0) target = $region21
  $region20: #{tpu_custom_call.1} parent=0 // pred_region
    _
  $region21: #{tpu_custom_call.1} parent=0 // pred_fallthru
    _
  // Predicated region
  $region22: #{tpu_custom_call.1} parent=0 // pred_check
    _
  $region23: #{tpu_custom_call.1} parent=0 // pred_check_branch
    %278 = sbr.rel (0) target = $region25
  $region24: #{tpu_custom_call.1} parent=0 // pred_region
    _
  $region25: #{tpu_custom_call.1} parent=0 // pred_fallthru
    _

</llo_original>
